<compile_context>
chip_gen: v7x
topology: tpu7x:2x2x1
jax: 0.10.0
libtpu: 0.0.40
codegen_flags: <defaults>
</compile_context>

<pallas_src>
import functools

import jax
import jax.numpy as jnp
import numpy as np
from jax.experimental import pallas as pl
from jax.experimental.pallas import tpu as pltpu


# -------------------- helpers --------------------

def _round_up(v, m):
    return -(-int(v) // int(m)) * int(m)


def _pad_2d(tab, n_pad, d_pad):
    n, d = tab.shape
    return jnp.pad(tab, ((0, n_pad - n), (0, d_pad - d)))


def _vmem_ceiling_bytes():
    """Generation-aware VMEM ceiling (~75% of physical: 128 MiB v5e/v6e, 64 MiB v7x)."""
    try:
        cap = int(pltpu.get_tpu_info().vmem_capacity_bytes)
    except Exception:  # conservative default if the query is unavailable
        cap = 64 << 20
    return (cap * 3) // 4


def _pick_block_rows(l, k_pad, cap=512):
    """Output rows per grid step.

    Multiple of 8 (sublanes), cap raised to 512 so large L is not step-overhead bound,
    bounded so the in-kernel (BR, K) coefficient build stays small, and chosen so the grid
    has >= 2 steps when L > 8 (lets "parallel" shard across v7x's 2 TCs; no-op on v5e/v6e).
    """
    br = min(cap, _round_up(max(pl.cdiv(l, 2), 8), 8))
    max_by_vmem = max(8, (((6 << 20) // (max(k_pad, 1) * 12)) // 8) * 8)
    return max(8, min(br, max_by_vmem))


def _compiler_params(resident_bytes, per_step_bytes, kernel_scratch_bytes):
    # Resident table (double-buffered by default pipelining) + per-step I/O double buffers
    # + in-kernel intermediates + margin, clamped to the generation-aware ceiling.
    # TODO(synk): pipeline_mode=pl.Buffered(1) on the constant-index table BlockSpec would
    #             halve the resident double-buffer once verified on all target jax versions.
    needed = 2 * resident_bytes + 2 * per_step_bytes + kernel_scratch_bytes + (4 << 20)
    limit = int(min(max(needed, 32 << 20), _vmem_ceiling_bytes()))
    return pltpu.CompilerParams(
        dimension_semantics=("parallel",),   # disjoint output blocks, no accumulator
        vmem_limit_bytes=limit,
    )


# -------------------- kernels --------------------

def _hermite_gather_kernel(meta_ref, wm_ref, o_ref, *, n_pad, inv_n):
    """out[r] = h0*W[i] + (h1/n)*M[i] + h2*W[i+1] + (h3/n)*M[i+1],  i = idx[r].

    One (BR, 2*n_pad) @ (2*n_pad, d_pad) bf16 MXU matmul against the VMEM-resident fused
    [W ; M] table; the coefficient matrix is built on the VPU from iota==idx compares.
    """
    idxf = meta_ref[0]                        # (BR, 1) f32, integer-valued
    t = meta_ref[1]                           # (BR, 1) f32
    idx = idxf.astype(jnp.int32)

    t2 = t * t
    t3 = t2 * t
    h0 = 1.0 - 3.0 * t2 + 2.0 * t3
    h1 = (t - 2.0 * t2 + t3) * inv_n          # uniform knots: dx == 1/n (constant)
    h2 = 3.0 * t2 - 2.0 * t3
    h3 = (t3 - t2) * inv_n

    br = idx.shape[0]
    cols = jax.lax.broadcasted_iota(jnp.int32, (br, n_pad), 1)
    sel0 = cols == idx                        # one-hot of idx
    sel1 = cols == idx + 1                    # one-hot of idx + 1
    cy = jnp.where(sel0, h0, 0.0) + jnp.where(sel1, h2, 0.0)   # coefficients vs W rows
    cm = jnp.where(sel0, h1, 0.0) + jnp.where(sel1, h3, 0.0)   # coefficients vs M rows
    coeff = jnp.concatenate([cy, cm], axis=1).astype(jnp.bfloat16)

    o_ref[...] = jnp.dot(coeff, wm_ref[...],
                         preferred_element_type=jnp.float32).astype(o_ref.dtype)


def _onehot_gather_kernel(ids_ref, tab_ref, o_ref):
    """Plain embedding lookup as a one-hot bf16 matmul against the VMEM-resident table."""
    ids = ids_ref[...]                        # (BR, 1) int32
    br = ids.shape[0]
    n = tab_ref.shape[0]
    cols = jax.lax.broadcasted_iota(jnp.int32, (br, n), 1)
    onehot = (cols == ids).astype(jnp.bfloat16)          # exact 0/1 in bf16
    o_ref[...] = jnp.dot(onehot, tab_ref[...],
                         preferred_element_type=jnp.float32).astype(o_ref.dtype)


def _row_copy_kernel(ids_ref, row_ref, o_ref):
    del ids_ref  # consumed by the index_map (scalar prefetch)
    o_ref[...] = row_ref[...]


# -------------------- glue + wrappers --------------------

def _build_wm_table(weight, n_pad, d_pad):
    """bf16 fused [W ; M] table: rows [0, n_pad) = weights, rows [n_pad, 2*n_pad) = slopes."""
    n, _ = weight.shape
    w = weight.astype(jnp.float32)
    m = (w[1:] - w[:-1]) * float(n)                       # uniform knots: dx == 1/n
    m = jnp.concatenate([m[:1], (m[1:] + m[:-1]) * 0.5, m[-1:]], axis=0)
    return jnp.concatenate(
        [_pad_2d(w, n_pad, d_pad), _pad_2d(m, n_pad, d_pad)], axis=0
    ).astype(jnp.bfloat16)


def interp_lookup(weight, inputs, max_target_buckets, *, wm_table=None):
    """Fused `_get_expanded_embeddings` + `F.embedding`: the (T, d) expanded table is never
    materialized in HBM; only the L looked-up rows are produced (O(L*d) traffic)."""
    # TODO(synk): add a streamed-K / DMA-gather fallback for huge num_embeddings*embedding_dim
    #             where the fused bf16 [W;M] table no longer fits the VMEM budget.
    n, d = weight.shape
    flat = inputs.reshape(-1).astype(jnp.int32)
    l = int(flat.shape[0])

    n_pad = _round_up(n, 128)          # MXU-friendly contraction width (K = 2*n_pad)
    d_pad = _round_up(d, 128)          # lane-dense output stores
    if wm_table is None:
        wm_table = _build_wm_table(weight, n_pad, d_pad)

    # Per-id spline parameters: closed-form interval index (no searchsorted), dx == 1/n.
    # Clamp to n-2 so idx+1 stays in range: queries past the last knot extrapolate the last
    # spline interval (the raw torch code would index out of bounds there).
    xs = flat.astype(jnp.float32) * (1.0 / float(max_target_buckets))
    idxf = jnp.clip(jnp.ceil(xs * float(n)) - 1.0, 0.0, float(n - 2))
    t = xs * float(n) - idxf

    br = _pick_block_rows(l, 2 * n_pad)
    l_pad = _round_up(l, br)
    pad = ((0, l_pad - l),)
    meta = jnp.stack([jnp.pad(idxf, pad), jnp.pad(t, pad)], axis=0).reshape(2, l_pad, 1)

    resident = int(wm_table.size) * 2                       # bf16 bytes
    per_step = br * d_pad * 4 + 2 * br * 128 * 4            # output block + packed meta block
    scratch = 3 * br * 2 * n_pad * 4                        # coefficient-build intermediates
    cost = pl.CostEstimate(
        flops=int(2 * l_pad * 2 * n_pad * d_pad + 20 * l_pad),
        transcendentals=0,
        bytes_accessed=int(resident + l_pad * d_pad * 4 + 2 * l_pad * 4),
    )

    out = pl.pallas_call(
        functools.partial(_hermite_gather_kernel, n_pad=n_pad, inv_n=1.0 / float(n)),
        out_shape=jax.ShapeDtypeStruct((l_pad, d_pad), weight.dtype),
        grid=(l_pad // br,),
        in_specs=[
            pl.BlockSpec((2, br, 1), lambda i: (0, i, 0)),        # packed (idx, t) per row
            pl.BlockSpec((2 * n_pad, d_pad), lambda i: (0, 0)),   # fused [W;M] (VMEM-resident)
        ],
        out_specs=pl.BlockSpec((br, d_pad), lambda i: (i, 0)),
        compiler_params=_compiler_params(resident, per_step, scratch),
        cost_estimate=cost,
    )(meta, wm_table)

    return out[:l, :d].reshape(inputs.shape + (d,))


def _dma_row_gather(table, flat_ids):
    """Exact per-row DMA gather: scalar-prefetched ids drive the input index_map.
    O(L*d) HBM traffic, no VMEM ceiling on the table (one pipeline step per row)."""
    n, d = table.shape
    l = int(flat_ids.shape[0])
    d_pad = _round_up(d, 128)
    tab = jnp.pad(table, ((0, 0), (0, d_pad - d))).reshape(n, 1, d_pad)
    ids = jnp.clip(flat_ids, 0, n - 1).astype(jnp.int32)    # F.embedding would raise on OOB

    out = pl.pallas_call(
        _row_copy_kernel,
        out_shape=jax.ShapeDtypeStruct((l, 1, d_pad), table.dtype),
        grid_spec=pltpu.PrefetchScalarGridSpec(
            num_scalar_prefetch=1,
            grid=(l,),
            in_specs=[pl.BlockSpec((1, 1, d_pad), lambda i, ids_ref: (ids_ref[i], 0, 0))],
            out_specs=pl.BlockSpec((1, 1, d_pad), lambda i, ids_ref: (i, 0, 0)),
        ),
        compiler_params=pltpu.CompilerParams(dimension_semantics=("arbitrary",)),
    )(ids, tab)
    return out.reshape(l, d_pad)[:, :d]


def embedding_lookup(weight, inputs, *, table_bf16=None, method="auto"):
    """torch.nn.functional.embedding(inputs, weight).

    method:
      "onehot" - batched one-hot bf16 MXU gather against the VMEM-resident table
                 (fast for large L; values rounded to bf16).
      "gather" - exact per-row DMA gather driven by scalar-prefetched ids (no VMEM ceiling).
      "auto"   - "onehot" when the table + working set fits the VMEM budget, else "gather".
    """
    n, d = weight.shape
    flat = inputs.reshape(-1).astype(jnp.int32)
    l = int(flat.shape[0])
    n_pad = _round_up(n, 128)
    d_pad = _round_up(d, 128)

    br = _pick_block_rows(l, n_pad)
    resident = n_pad * d_pad * 2                            # bf16 table bytes
    per_step = br * d_pad * 4 + br * 128 * 4
    scratch = 3 * br * n_pad * 4
    if method == "auto":
        fits = 2 * resident + 2 * per_step + scratch + (4 << 20) <= _vmem_ceiling_bytes()
        method = "onehot" if fits else "gather"

    if method == "gather":
        return _dma_row_gather(weight, flat).reshape(inputs.shape + (d,))

    if table_bf16 is None:
        table_bf16 = _pad_2d(weight.astype(jnp.float32), n_pad, d_pad).astype(jnp.bfloat16)

    l_pad = _round_up(l, br)
    ids_p = jnp.pad(flat, (0, l_pad - l)).reshape(l_pad, 1)
    cost = pl.CostEstimate(
        flops=int(2 * l_pad * n_pad * d_pad),
        transcendentals=0,
        bytes_accessed=int(resident + l_pad * d_pad * 4 + l_pad * 4),
    )

    out = pl.pallas_call(
        _onehot_gather_kernel,
        out_shape=jax.ShapeDtypeStruct((l_pad, d_pad), weight.dtype),
        grid=(l_pad // br,),
        in_specs=[
            pl.BlockSpec((br, 1), lambda i: (i, 0)),              # ids per output row
            pl.BlockSpec((n_pad, d_pad), lambda i: (0, 0)),       # table (VMEM-resident)
        ],
        out_specs=pl.BlockSpec((br, d_pad), lambda i: (i, 0)),
        compiler_params=_compiler_params(resident, per_step, scratch),
        cost_estimate=cost,
    )(ids_p, table_bf16)

    return out[:l, :d].reshape(inputs.shape + (d,))


class ExpandableEmbedding:
    """JAX/Pallas port of the PyTorch module (forward pass).

    The Hermite slope table is precomputed once and stored fused with the weights as a
    bf16 [W ; M] table, so the interpolating lookup is a single MXU matmul per tile.
    """

    def __init__(self, num_embeddings: int, embedding_dim: int, key):
        self.max_buckets = num_embeddings
        self.embedding_dim = embedding_dim
        # torch.nn.Embedding default init: N(0, 1)
        self.weight = jax.random.normal(
            key, (num_embeddings, embedding_dim), dtype=jnp.float32)
        self._refresh_tables()

    def _refresh_tables(self):
        # Call again if self.weight is mutated (e.g. after an optimizer step).
        n, d = self.weight.shape
        self._n_pad = _round_up(n, 128)
        self._d_pad = _round_up(d, 128)
        self._wm_table = _build_wm_table(self.weight, self._n_pad, self._d_pad)
        self._table_bf16 = _pad_2d(self.weight.astype(jnp.float32),
                                   self._n_pad, self._d_pad).astype(jnp.bfloat16)

    def _get_expanded_embeddings(self, max_target_buckets: int):
        return interp_lookup(self.weight,
                             jnp.arange(max_target_buckets, dtype=jnp.int32),
                             max_target_buckets, wm_table=self._wm_table)

    def __call__(self, inputs, interpolate: bool = False, max_target_buckets=None):
        if interpolate:
            assert max_target_buckets is not None, \
                "max_target_buckets should be specified when interpolating"
            # Fused expand + lookup: the expanded table is never materialized in HBM.
            return interp_lookup(self.weight, inputs, max_target_buckets,
                                 wm_table=self._wm_table)
        return embedding_lookup(self.weight, inputs, table_bf16=self._table_bf16)


# -------------------- pure-JAX reference (verification only) --------------------

def _ref_expand(weight, t_out):
    n = weight.shape[0]
    x = jnp.arange(n, dtype=jnp.float32) / n
    xs = jnp.arange(t_out, dtype=jnp.float32) / t_out
    m = (weight[1:] - weight[:-1]) / (x[1:] - x[:-1])[:, None]
    m = jnp.concatenate([m[:1], (m[1:] + m[:-1]) / 2, m[-1:]], axis=0)
    # same clamp as the kernel glue (the raw torch code would index OOB past the last knot)
    idxs = jnp.clip(jnp.searchsorted(x[1:], xs), 0, n - 2)
    dx = x[idxs + 1] - x[idxs]
    t = (xs - x[idxs]) / dx
    ttpow = t[None, :] ** jnp.arange(4, dtype=jnp.float32)[:, None]
    A = jnp.array([[1, 0, -3, 2], [0, 1, -2, 1], [0, 0, 3, -2], [0, 0, -1, 1]],
                  dtype=jnp.float32)
    hh = (A @ ttpow)[..., None]
    dxe = dx[:, None]
    return (hh[0] * weight[idxs] + hh[1] * m[idxs] * dxe
            + hh[2] * weight[idxs + 1] + hh[3] * m[idxs + 1] * dxe)


if __name__ == "__main__":
    key = jax.random.PRNGKey(0)
    wkey, ikey, w2key, i2key = jax.random.split(key, 4)

    # ---------- config A: lane-aligned shapes ----------
    num_embeddings, embedding_dim, max_target_buckets = 16, 128, 32
    mod = ExpandableEmbedding(num_embeddings, embedding_dim, wkey)
    inputs = jax.random.randint(ikey, (2, 8), 0, max_target_buckets, dtype=jnp.int32)

    out_interp = mod(inputs, interpolate=True, max_target_buckets=max_target_buckets)
    plain_ids = jnp.mod(inputs, num_embeddings)
    out_plain = mod(plain_ids)                                             # one-hot bf16 path
    out_gather = embedding_lookup(mod.weight, plain_ids, method="gather")  # exact DMA fallback
    jax.block_until_ready((out_interp, out_plain, out_gather))

    ref_tab = _ref_expand(mod.weight, max_target_buckets)
    # tolerances reflect bf16 table / coefficient storage (review: drop Precision.HIGHEST)
    np.testing.assert_allclose(np.asarray(out_interp), np.asarray(ref_tab[inputs]),
                               rtol=5e-2, atol=1e-1)
    np.testing.assert_allclose(np.asarray(out_plain), np.asarray(mod.weight[plain_ids]),
                               rtol=1e-2, atol=1e-2)
    np.testing.assert_allclose(np.asarray(out_gather), np.asarray(mod.weight[plain_ids]),
                               rtol=1e-6, atol=1e-6)

    # ---------- config B: un-aligned shapes exercise the padding paths ----------
    n_b, d_b, t_b = 10, 40, 24
    mod_b = ExpandableEmbedding(n_b, d_b, w2key)
    inputs_b = jax.random.randint(i2key, (3, 5), 0, t_b, dtype=jnp.int32)

    out_b_interp = mod_b(inputs_b, interpolate=True, max_target_buckets=t_b)
    plain_b = jnp.mod(inputs_b, n_b)
    out_b_plain = mod_b(plain_b)
    jax.block_until_ready((out_b_interp, out_b_plain))

    ref_tab_b = _ref_expand(mod_b.weight, t_b)
    np.testing.assert_allclose(np.asarray(out_b_interp), np.asarray(ref_tab_b[inputs_b]),
                               rtol=5e-2, atol=1e-1)
    np.testing.assert_allclose(np.asarray(out_b_plain), np.asarray(mod_b.weight[plain_b]),
                               rtol=1e-2, atol=1e-2)

    print("KERNEL_OK")
</pallas_src>

<mosaic_0001>
module attributes {stable_mosaic.version = 11 : i64} {
  func.func @_hermite_gather_kernel(%arg0: i32, %arg1: memref<2x8x1xf32, #tpu.memory_space<vmem>>, %arg2: memref<256x128xbf16, #tpu.memory_space<vmem>>, %arg3: memref<8x128xf32, #tpu.memory_space<vmem>>) attributes {dimension_semantics = [#tpu.dimension_semantics<parallel>], iteration_bounds = array<i64: 2>, scalar_prefetch = 0 : i64, scratch_operands = 0 : i64, tpu.core_type = #tpu.core_type<tc>, window_params = [{transform_indices = @transform_0, window_bounds = array<i64: 2, 8, 1>}, {pipeline_mode = #tpu.pipeline_mode<synchronous>, transform_indices = @transform_1, window_bounds = array<i64: 256, 128>}, {transform_indices = @transform_2, window_bounds = array<i64: 8, 128>}]} {
    %c0 = arith.constant 0 : index
    %c0_0 = arith.constant 0 : index
    %c0_1 = arith.constant 0 : index
    %0 = vector.load %arg1[%c0, %c0_0, %c0_1] : memref<2x8x1xf32, #tpu.memory_space<vmem>>, vector<1x8x1xf32>
    %1 = vector.shape_cast %0 : vector<1x8x1xf32> to vector<8x1xf32>
    %c1 = arith.constant 1 : index
    %c0_2 = arith.constant 0 : index
    %c0_3 = arith.constant 0 : index
    %2 = vector.load %arg1[%c1, %c0_2, %c0_3] : memref<2x8x1xf32, #tpu.memory_space<vmem>>, vector<1x8x1xf32>
    %3 = vector.shape_cast %2 : vector<1x8x1xf32> to vector<8x1xf32>
    %4 = arith.fptosi %1 : vector<8x1xf32> to vector<8x1xi32>
    %5 = arith.mulf %3, %3 : vector<8x1xf32>
    %6 = arith.mulf %5, %3 : vector<8x1xf32>
    %cst = arith.constant 3.000000e+00 : f32
    %7 = vector.broadcast %cst : f32 to vector<8x1xf32>
    %8 = arith.mulf %7, %5 : vector<8x1xf32>
    %cst_4 = arith.constant 1.000000e+00 : f32
    %9 = vector.broadcast %cst_4 : f32 to vector<8x1xf32>
    %10 = arith.subf %9, %8 : vector<8x1xf32>
    %cst_5 = arith.constant 2.000000e+00 : f32
    %11 = vector.broadcast %cst_5 : f32 to vector<8x1xf32>
    %12 = arith.mulf %11, %6 : vector<8x1xf32>
    %13 = arith.addf %10, %12 : vector<8x1xf32>
    %cst_6 = arith.constant 2.000000e+00 : f32
    %14 = vector.broadcast %cst_6 : f32 to vector<8x1xf32>
    %15 = arith.mulf %14, %5 : vector<8x1xf32>
    %16 = arith.subf %3, %15 : vector<8x1xf32>
    %17 = arith.addf %16, %6 : vector<8x1xf32>
    %cst_7 = arith.constant 6.250000e-02 : f32
    %18 = vector.broadcast %cst_7 : f32 to vector<8x1xf32>
    %19 = arith.mulf %17, %18 : vector<8x1xf32>
    %cst_8 = arith.constant 3.000000e+00 : f32
    %20 = vector.broadcast %cst_8 : f32 to vector<8x1xf32>
    %21 = arith.mulf %20, %5 : vector<8x1xf32>
    %cst_9 = arith.constant 2.000000e+00 : f32
    %22 = vector.broadcast %cst_9 : f32 to vector<8x1xf32>
    %23 = arith.mulf %22, %6 : vector<8x1xf32>
    %24 = arith.subf %21, %23 : vector<8x1xf32>
    %25 = arith.subf %6, %5 : vector<8x1xf32>
    %cst_10 = arith.constant 6.250000e-02 : f32
    %26 = vector.broadcast %cst_10 : f32 to vector<8x1xf32>
    %27 = arith.mulf %25, %26 : vector<8x1xf32>
    %28 = tpu.iota {dimensions = array<i32: 1>} : vector<8x128xi32>
    %29 = vector.broadcast %4 : vector<8x1xi32> to vector<8x128xi32>
    %30 = arith.cmpi eq, %28, %29 : vector<8x128xi32>
    %c1_i32 = arith.constant 1 : i32
    %31 = vector.broadcast %c1_i32 : i32 to vector<8x1xi32>
    %32 = arith.addi %4, %31 : vector<8x1xi32>
    %33 = vector.broadcast %32 : vector<8x1xi32> to vector<8x128xi32>
    %34 = arith.cmpi eq, %28, %33 : vector<8x128xi32>
    %cst_11 = arith.constant 0.000000e+00 : f32
    %35 = vector.shape_cast %13 : vector<8x1xf32> to vector<8x1xf32>
    %36 = vector.broadcast %35 : vector<8x1xf32> to vector<8x128xf32>
    %37 = vector.broadcast %cst_11 : f32 to vector<8x128xf32>
    %38 = arith.select %30, %36, %37 : vector<8x128xi1>, vector<8x128xf32>
    %cst_12 = arith.constant 0.000000e+00 : f32
    %39 = vector.shape_cast %24 : vector<8x1xf32> to vector<8x1xf32>
    %40 = vector.broadcast %39 : vector<8x1xf32> to vector<8x128xf32>
    %41 = vector.broadcast %cst_12 : f32 to vector<8x128xf32>
    %42 = arith.select %34, %40, %41 : vector<8x128xi1>, vector<8x128xf32>
    %43 = arith.addf %38, %42 : vector<8x128xf32>
    %cst_13 = arith.constant 0.000000e+00 : f32
    %44 = vector.shape_cast %19 : vector<8x1xf32> to vector<8x1xf32>
    %45 = vector.broadcast %44 : vector<8x1xf32> to vector<8x128xf32>
    %46 = vector.broadcast %cst_13 : f32 to vector<8x128xf32>
    %47 = arith.select %30, %45, %46 : vector<8x128xi1>, vector<8x128xf32>
    %cst_14 = arith.constant 0.000000e+00 : f32
    %48 = vector.shape_cast %27 : vector<8x1xf32> to vector<8x1xf32>
    %49 = vector.broadcast %48 : vector<8x1xf32> to vector<8x128xf32>
    %50 = vector.broadcast %cst_14 : f32 to vector<8x128xf32>
    %51 = arith.select %34, %49, %50 : vector<8x128xi1>, vector<8x128xf32>
    %52 = arith.addf %47, %51 : vector<8x128xf32>
    %53 = tpu.concatenate %43, %52 in 1 : vector<8x128xf32>, vector<8x128xf32> -> vector<8x256xf32>
    %54 = arith.truncf %53 : vector<8x256xf32> to vector<8x256xbf16>
    %c0_15 = arith.constant 0 : index
    %c0_16 = arith.constant 0 : index
    %55 = vector.load %arg2[%c0_15, %c0_16] : memref<256x128xbf16, #tpu.memory_space<vmem>>, vector<256x128xbf16>
    %cst_17 = arith.constant dense<0.000000e+00> : vector<8x128xf32>
    %56 = tpu.matmul %54, %55, %cst_17 {dimension_numbers = #tpu.dot_dimension_numbers<[1], [0], [0], [1], [0, 0, 1, 1], [], []>} : vector<8x256xbf16>, vector<256x128xbf16>, vector<8x128xf32> -> vector<8x128xf32>
    %c0_18 = arith.constant 0 : index
    %c0_19 = arith.constant 0 : index
    %57 = vector.load %arg3[%c0_18, %c0_19] : memref<8x128xf32, #tpu.memory_space<vmem>>, vector<8x128xf32>
    tpu.vector_store %arg3[%c0_18, %c0_19], %56 {strides = array<i32>} : memref<8x128xf32, #tpu.memory_space<vmem>>, vector<8x128xf32>,
    return
  }
  func.func @transform_0(%arg0: i32) -> (i32, i32, i32) {
    %c0_i32 = arith.constant 0 : i32
    %c0_i32_0 = arith.constant 0 : i32
    %c0_i32_1 = arith.constant 0 : i32
    return %c0_i32, %arg0, %c0_i32_0 : i32, i32, i32
  }
  func.func @transform_1(%arg0: i32) -> (i32, i32) {
    %c0_i32 = arith.constant 0 : i32
    %c0_i32_0 = arith.constant 0 : i32
    %c0_i32_1 = arith.constant 0 : i32
    return %c0_i32, %c0_i32_0 : i32, i32
  }
  func.func @transform_2(%arg0: i32) -> (i32, i32) {
    %c0_i32 = arith.constant 0 : i32
    %c0_i32_0 = arith.constant 0 : i32
    return %arg0, %c0_i32 : i32, i32
  }
}

</mosaic_0001>

<llo_original>
// kernel: tpu_custom_call.1
$region0: #{tpu_custom_call.1}
  #allocation0 [shape = 'u32[]', space=smem, size = 0x4, offset = 0x4, fixed_abs, tag = 'smem constant byte address 0x4 - core index']
  #allocation1 [shape = 'u32[144,128]{1,0:T(1,128)}', space=vmem, size = 0x12000, scoped, tag = 'internal scratch']
  %s0 = inlined_call_operand.vmem [shape: f32[2,16,1], index: 0, kind: input, shape index: {}]
  %s1 = inlined_call_operand.hbm [shape: bf16[256,128], index: 1, kind: input, shape index: {}]
  %s2 = inlined_call_operand.hbm [shape: f32[16,128], index: 2, kind: output, shape index: {}]
  %s3 = sld [smem:[#allocation0]]
  $region83: #{tpu_custom_call.1} parent=0
    _
  %s5 = ssub.s32 1, %s3
  %s6 = scalar_select 0, %s5, %s3
  $region1: #{tpu_custom_call.1} parent=0
    #allocation2 [shape = 'u8[16384]{0}', space=vmem, size = 0x4000, scoped, tag = 'input window, operand 0']
    #allocation3 [shape = 'u8[65536]{0}', space=vmem, size = 0x10000, scoped, tag = 'input window, operand 1, single buffered']
    #allocation4 [shape = 's32[2]{0}', space=sflag, size = 0x8, scoped, tag = 'scoped memory for tpu_custom_call.1']
    #allocation5 [shape = 's32[2]{0}', space=sflag, size = 0x8, scoped, tag = 'scoped memory for tpu_custom_call.1']
    #allocation6 [shape = 'u8[8192]{0}', space=vmem, size = 0x2000, scoped, tag = 'output window, operand 0']
    %7 = vsyncpa [#allocation4], 0
    %8 = vsyncpa [#allocation5], 0
    %s9 = scalar_lea.sflag [#allocation5], 1
    %10 = vsyncpa %s9, 0
    loop: start=0, step=1, limit=4
    $region2: #{tpu_custom_call.1} parent=1 // loop_pre_header
      _
    $region3: #{tpu_custom_call.1} parent=1 // loop_header
      %s12 = sphi 0, %s16
      %p13 = scmp.ge.s32.totalorder %s12, 4
      %s22 = sphi 0, %s24
      %s25 = sphi 0, %s22
      %s26 = sphi 0, %s25
      %s42 = sphi 0, %s26
      %s46 = sphi 0, %s46
      %s48 = sphi 0, %s46
      %s49 = sphi 0, %s48
      %s63 = sphi 0, %s49
      %s69 = sphi 0, %s71
      %s72 = sphi 0, %s69
      %s73 = sphi 0, %s72
      %s89 = sphi 0, %s73
    $region4: #{tpu_custom_call.1} parent=1 // loop_header_branch
      %15 = sbr.rel (%p13) target = $region8
    $region5: #{tpu_custom_call.1} parent=1 // loop_body
      %s17 = ssub.s32 %s12, 1
      %s18 = ssub.s32 %s12, 2
      %s19 = sadd.s32 %s12, 1
      %s20 = ssub.s32 %s12, %s19
      %p21 = scmp.eq.s32.totalorder %s20, 0
      %s23 = sadd.s32 %s22, 1
      %s24 = scalar_select %p21, %s22, %s23
      %p27 = pneg %p21
      %p28 = scmp.eq.s32.totalorder %s12, 1
      %p29 = por %p27, %p28
      %p30 = scmp.ne.s32.totalorder %s22, %s25
      %p31 = scmp.eq.s32.totalorder %s12, 0
      %p32 = por %p30, %p31
      %p33 = scmp.ne.s32.totalorder %s22, %s25
      %p34 = scmp.eq.s32.totalorder %s17, 1
      %p35 = por %p33, %p34
      %p36 = scmp.ne.s32.totalorder %s25, %s26
      %p37 = scmp.eq.s32.totalorder %s17, 0
      %p38 = por %p36, %p37
      %p39 = scmp.ne.s32.totalorder %s25, %s26
      %p40 = scmp.eq.s32.totalorder %s18, 1
      %p41 = por %p39, %p40
      %p43 = scmp.ne.s32.totalorder %s26, %s42
      %p44 = scmp.eq.s32.totalorder %s18, 0
      %p45 = por %p43, %p44
      %s47 = sadd.s32 %s46, 1
      %p50 = scmp.eq.s32.totalorder %s12, 1
      %p51 = scmp.ne.s32.totalorder %s46, %s48
      %p52 = scmp.eq.s32.totalorder %s12, 0
      %p53 = por %p51, %p52
      %p54 = scmp.ne.s32.totalorder %s46, %s48
      %p55 = scmp.eq.s32.totalorder %s17, 1
      %p56 = por %p54, %p55
      %p57 = scmp.ne.s32.totalorder %s48, %s49
      %p58 = scmp.eq.s32.totalorder %s17, 0
      %p59 = por %p57, %p58
      %p60 = scmp.ne.s32.totalorder %s48, %s49
      %p61 = scmp.eq.s32.totalorder %s18, 1
      %p62 = por %p60, %p61
      %p64 = scmp.ne.s32.totalorder %s49, %s63
      %p65 = scmp.eq.s32.totalorder %s18, 0
      %p66 = por %p64, %p65
      %s67 = ssub.s32 %s12, %s19
      %p68 = scmp.eq.s32.totalorder %s67, 0
      %s70 = sadd.s32 %s69, 1
      %s71 = scalar_select %p68, %s69, %s70
      %p74 = pneg %p68
      %p75 = scmp.eq.s32.totalorder %s12, 1
      %p76 = por %p74, %p75
      %p77 = scmp.ne.s32.totalorder %s69, %s72
      %p78 = scmp.eq.s32.totalorder %s12, 0
      %p79 = por %p77, %p78
      %p80 = scmp.ne.s32.totalorder %s69, %s72
      %p81 = scmp.eq.s32.totalorder %s17, 1
      %p82 = por %p80, %p81
      %p83 = scmp.ne.s32.totalorder %s72, %s73
      %p84 = scmp.eq.s32.totalorder %s17, 0
      %p85 = por %p83, %p84
      %p86 = scmp.ne.s32.totalorder %s72, %s73
      %p87 = scmp.eq.s32.totalorder %s18, 1
      %p88 = por %p86, %p87
      %p90 = scmp.ne.s32.totalorder %s73, %s89
      %p91 = scmp.eq.s32.totalorder %s18, 0
      %p92 = por %p90, %p91
      %p93 = scmp.le.s32.totalorder 1, %s12
      %p94 = scmp.lt.s32.totalorder %s12, 3
      %p95 = pnand %p93, %p94
      %p96 = pneg %p95
      // Predicated region
      $region9: #{tpu_custom_call.1} parent=5 // pred_check
        _
      $region10: #{tpu_custom_call.1} parent=5 // pred_check_branch
        %98 = sbr.rel (%p95) target = $region12
      $region11: #{tpu_custom_call.1} parent=5 // pred_region
        %s99 = ssub.s32 %s12, 1
        // Predicated region
        $region13: #{tpu_custom_call.1} parent=11 // pred_check
          %p100 = pneg %p59
        $region14: #{tpu_custom_call.1} parent=11 // pred_check_branch
          %102 = sbr.rel (%p100) target = $region16
        $region15: #{tpu_custom_call.1} parent=11 // pred_region
          %s104 = ssub.s32 2048, 2048
          %105 = vsyncadd [#allocation4], %s104
          %s106 = sshll.u32 [#allocation3], 4
          %s107 = int_to_ptr.vmem [resolvable:$true] %s106
          %112 = dma.hbm_to_vmem [thread:$0]  %s1, 2048, %s107, [#allocation4], 64, 64, 4
        $region16: #{tpu_custom_call.1} parent=11 // pred_fallthru
          _
      $region12: #{tpu_custom_call.1} parent=5 // pred_fallthru
        _
      %p113 = scmp.lt.s32.totalorder %s12, 2
      // Predicated region
      $region17: #{tpu_custom_call.1} parent=5 // pred_check
        %p114 = pneg %p113
      $region18: #{tpu_custom_call.1} parent=5 // pred_check_branch
        %116 = sbr.rel (%p114) target = $region20
      $region19: #{tpu_custom_call.1} parent=5 // pred_region
        // Predicated region
        $region21: #{tpu_custom_call.1} parent=19 // pred_check
          %p117 = pneg %p32
        $region22: #{tpu_custom_call.1} parent=19 // pred_check_branch
          %119 = sbr.rel (%p117) target = $region24
        $region23: #{tpu_custom_call.1} parent=19 // pred_region
          %s120 = sand.u32 %s22, 1
          %s121 = sand.u32 %s22, 1
          %s122 = smul.addr %s121, 16
          %s123 = scalar_lea.vmem [#allocation2], %s122
          %s124 = smul.addr %s12, 8
          %s125 = scalar_lea.vmem %s0, %s124
          // Predicated region
          $region25: #{tpu_custom_call.1} parent=23 // pred_check
            _
          $region26: #{tpu_custom_call.1} parent=23 // pred_check_branch
            %127 = sbr.rel (0) target = $region28
          $region27: #{tpu_custom_call.1} parent=23 // pred_region
            // Predicated region
            $region29: #{tpu_custom_call.1} parent=27 // pred_check
              _
            $region30: #{tpu_custom_call.1} parent=27 // pred_check_branch
              %129 = sbr.rel (0) target = $region32
            $region31: #{tpu_custom_call.1} parent=27 // pred_region
              // Predicated region
              $region44: #{tpu_custom_call.1} parent=31 // pred_check
                _
              $region45: #{tpu_custom_call.1} parent=31 // pred_check_branch
                %146 = sbr.rel (0) target = $region47
              $region46: #{tpu_custom_call.1} parent=31 // pred_region
                loop: start=0, step=1, limit=1
                $region48: #{tpu_custom_call.1} parent=46 // loop_pre_header
                  _
                $region49: #{tpu_custom_call.1} parent=46 // loop_header
                  %s148 = sphi 0, %s152
                  %p149 = scmp.ge.s32.totalorder %s148, 1
                  %s153 = sphi %s125, %s125
                  %s154 = sphi %s123, %s123
                $region50: #{tpu_custom_call.1} parent=46 // loop_header_branch
                  %151 = sbr.rel (%p149) target = $region54
                $region51: #{tpu_custom_call.1} parent=46 // loop_body
                  %v155 = vld [vmem:[%s153] sm:$0xff]
                  %156 = vst [vmem:[%s154] sm:$0xff] %v155
                  %v157 = vld [vmem:[%s153 + $0x10] sm:$0xff]
                  %158 = vst [vmem:[%s154 + $0x8] sm:$0xff] %v157
                $region52: #{tpu_custom_call.1} parent=46 // loop_footer
                  %s152 = sadd.s32 1, %s148
                $region53: #{tpu_custom_call.1} parent=46 // loop_footer_branch
                  %147 = sbr.rel target = $region49
                $region54: #{tpu_custom_call.1} parent=46 // loop_exit
                  _
              $region47: #{tpu_custom_call.1} parent=31 // pred_fallthru
                _
              // Predicated region
              $region55: #{tpu_custom_call.1} parent=31 // pred_check
                _
              $region56: #{tpu_custom_call.1} parent=31 // pred_check_branch
                %160 = sbr.rel target = $region58
              $region57: #{tpu_custom_call.1} parent=31 // pred_region
                _
              $region58: #{tpu_custom_call.1} parent=31 // pred_fallthru
                _
            $region32: #{tpu_custom_call.1} parent=27 // pred_fallthru
              _
            // Predicated region
            $region33: #{tpu_custom_call.1} parent=27 // pred_check
              _
            $region34: #{tpu_custom_call.1} parent=27 // pred_check_branch
              %131 = sbr.rel target = $region36
            $region35: #{tpu_custom_call.1} parent=27 // pred_region
              loop: start=0, step=1, limit=1
              $region37: #{tpu_custom_call.1} parent=35 // loop_pre_header
                _
              $region38: #{tpu_custom_call.1} parent=35 // loop_header
                %s134 = sphi 0, %s138
                %p135 = scmp.ge.s32.totalorder %s134, 1
                %s139 = sphi %s125, %s125
                %s140 = sphi %s123, %s123
              $region39: #{tpu_custom_call.1} parent=35 // loop_header_branch
                %137 = sbr.rel (%p135) target = $region43
              $region40: #{tpu_custom_call.1} parent=35 // loop_body
                %v141 = vld [vmem:[%s139] sm:$0xff]
                %142 = vst [vmem:[%s140] sm:$0xff] %v141
                %v143 = vld [vmem:[%s139 + $0x10] sm:$0xff]
                %144 = vst [vmem:[%s140 + $0x8] sm:$0xff] %v143
              $region41: #{tpu_custom_call.1} parent=35 // loop_footer
                %s138 = sadd.s32 1, %s134
              $region42: #{tpu_custom_call.1} parent=35 // loop_footer_branch
                %133 = sbr.rel target = $region38
              $region43: #{tpu_custom_call.1} parent=35 // loop_exit
                _
            $region36: #{tpu_custom_call.1} parent=27 // pred_fallthru
              _
          $region28: #{tpu_custom_call.1} parent=23 // pred_fallthru
            _
          %161 = vnop
        $region24: #{tpu_custom_call.1} parent=19 // pred_fallthru
          _
      $region20: #{tpu_custom_call.1} parent=5 // pred_fallthru
        _
      %p162 = scmp.le.s32.totalorder 1, %s12
      %p163 = scmp.lt.s32.totalorder %s12, 3
      %p164 = pnand %p162, %p163
      %p165 = pneg %p164
      // Predicated region
      $region59: #{tpu_custom_call.1} parent=5 // pred_check
        _
      $region60: #{tpu_custom_call.1} parent=5 // pred_check_branch
        %167 = sbr.rel (%p164) target = $region62
      $region61: #{tpu_custom_call.1} parent=5 // pred_region
        %s168 = ssub.s32 %s12, 1
        %s169 = sand.u32 %s25, 1
        %s170 = sand.u32 %s25, 1
        %s171 = smul.addr %s170, 16
        %s172 = scalar_lea.vmem [#allocation2], %s171
        // Predicated region
        $region63: #{tpu_custom_call.1} parent=61 // pred_check
          %p173 = pneg %p38
        $region64: #{tpu_custom_call.1} parent=61 // pred_check_branch
          %175 = sbr.rel (%p173) target = $region66
        $region65: #{tpu_custom_call.1} parent=61 // pred_region
          _
        $region66: #{tpu_custom_call.1} parent=61 // pred_fallthru
          _
        // Predicated region
        $region67: #{tpu_custom_call.1} parent=61 // pred_check
          %p176 = pneg %p59
        $region68: #{tpu_custom_call.1} parent=61 // pred_check_branch
          %178 = sbr.rel (%p176) target = $region70
        $region69: #{tpu_custom_call.1} parent=61 // pred_region
          %179 = dma.done [#allocation4], 2048
        $region70: #{tpu_custom_call.1} parent=61 // pred_fallthru
          _
        %s180 = sand.u32 %s25, 1
        %s181 = sand.u32 %s25, 1
        %s182 = smul.addr %s181, 16
        %s183 = scalar_lea.vmem [#allocation2], %s182
        %p184 = pneg %p38
        %p185 = pneg %p35
        %p186 = pneg %p59
        %p187 = pneg %p56
        %p188 = pneg %p85
        %p189 = pneg %p82
        %s190 = sand.u32 %s72, 1
        %s191 = scalar_lea.sflag [#allocation5], %s190
        %s192 = sand.u32 %s72, 1
        %s193 = smul.addr %s192, 8
        %s194 = scalar_lea.vmem [#allocation6], %s193
        %v196 = vld [vmem:[%s172] sm:$0xff]
        %s197 = scalar_lea.vmem %s172, 8 [#allocation2]
        %v198 = vld [vmem:[%s197] sm:$0xff]
        %v199 = vcvt.f32.s32.to.zero.pseudo %v196
        %v200 = vmul.f32 %v198, %v198
        %v201 = vmul.f32 %v200, %v198
        %v202 = vmul.f32 %v200, 3.0
        %v203 = vsub.f32 1.0, %v202
        %v204 = vmul.f32 %v201, 2.0
        %v205 = vadd.f32 %v203, %v204
        %v206 = vmul.f32 %v200, 2.0
        %v207 = vsub.f32 %v198, %v206
        %v208 = vadd.f32 %v207, %v201
        %v209 = vmul.f32 %v208, 0.0625
        %v210 = vsub.f32 %v202, %v204
        %v211 = vsub.f32 %v201, %v200
        %v212 = vmul.f32 %v211, 0.0625
        %v213 = vlaneseq
        %v214 = vand.u32 %v213, 127
        %215 = vset.pattern.permute.xlu0 0
        %216 = vperm.xlu0 %215, %v199
        %v217 = vpop.permute.xlu0 %216
        %vm218 = vcmp.eq.s32.totalorder %v214, %v217
        %v219 = vadd.s32 %v199, 1
        %220 = vset.pattern.permute.xlu0 0
        %221 = vperm.xlu0 %220, %v219
        %v222 = vpop.permute.xlu0 %221
        %vm223 = vcmp.eq.s32.totalorder %v214, %v222
        %225 = vset.pattern.permute.xlu0 0
        %226 = vperm.xlu0 %225, %v205
        %v227 = vpop.permute.xlu0 %226
        %v229 = vsel %vm218, %v227, 0.0
        %231 = vset.pattern.permute.xlu0 0
        %232 = vperm.xlu0 %231, %v210
        %v233 = vpop.permute.xlu0 %232
        %v235 = vsel %vm223, %v233, 0.0
        %v236 = vadd.f32 %v229, %v235
        %238 = vset.pattern.permute.xlu0 0
        %239 = vperm.xlu0 %238, %v209
        %v240 = vpop.permute.xlu0 %239
        %v242 = vsel %vm218, %v240, 0.0
        %244 = vset.pattern.permute.xlu0 0
        %245 = vperm.xlu0 %244, %v212
        %v246 = vpop.permute.xlu0 %245
        %v248 = vsel %vm223, %v246, 0.0
        %v249 = vadd.f32 %v242, %v248
        %v250 = vpack.c.bf16 %v236, %v236
        %v251 = vpack.c.bf16 %v249, %v249
        %v252 = vld [vmem:[#allocation3] sm:$0xf]
        %v253 = vld [vmem:[#allocation3 + $0x4] sm:$0xf]
        %v254 = vld [vmem:[#allocation3 + $0x8] sm:$0xf]
        %v255 = vld [vmem:[#allocation3 + $0xc] sm:$0xf]
        %v256 = vld [vmem:[#allocation3 + $0x10] sm:$0xf]
        %v257 = vld [vmem:[#allocation3 + $0x14] sm:$0xf]
        %v258 = vld [vmem:[#allocation3 + $0x18] sm:$0xf]
        %v259 = vld [vmem:[#allocation3 + $0x1c] sm:$0xf]
        %v260 = vld [vmem:[#allocation3 + $0x20] sm:$0xf]
        %v261 = vld [vmem:[#allocation3 + $0x24] sm:$0xf]
        %v262 = vld [vmem:[#allocation3 + $0x28] sm:$0xf]
        %v263 = vld [vmem:[#allocation3 + $0x2c] sm:$0xf]
        %v264 = vld [vmem:[#allocation3 + $0x30] sm:$0xf]
        %v265 = vld [vmem:[#allocation3 + $0x34] sm:$0xf]
        %v266 = vld [vmem:[#allocation3 + $0x38] sm:$0xf]
        %v267 = vld [vmem:[#allocation3 + $0x3c] sm:$0xf]
        %v268 = vld [vmem:[#allocation3 + $0x40] sm:$0xf]
        %v269 = vld [vmem:[#allocation3 + $0x44] sm:$0xf]
        %v270 = vld [vmem:[#allocation3 + $0x48] sm:$0xf]
        %v271 = vld [vmem:[#allocation3 + $0x4c] sm:$0xf]
        %v272 = vld [vmem:[#allocation3 + $0x50] sm:$0xf]
        %v273 = vld [vmem:[#allocation3 + $0x54] sm:$0xf]
        %v274 = vld [vmem:[#allocation3 + $0x58] sm:$0xf]
        %v275 = vld [vmem:[#allocation3 + $0x5c] sm:$0xf]
        %v276 = vld [vmem:[#allocation3 + $0x60] sm:$0xf]
        %v277 = vld [vmem:[#allocation3 + $0x64] sm:$0xf]
        %v278 = vld [vmem:[#allocation3 + $0x68] sm:$0xf]
        %v279 = vld [vmem:[#allocation3 + $0x6c] sm:$0xf]
        %v280 = vld [vmem:[#allocation3 + $0x70] sm:$0xf]
        %v281 = vld [vmem:[#allocation3 + $0x74] sm:$0xf]
        %v282 = vld [vmem:[#allocation3 + $0x78] sm:$0xf]
        %v283 = vld [vmem:[#allocation3 + $0x7c] sm:$0xf]
        %v316 = vunpack.c.l.b16 %v252
        %v317 = vunpack.c.l.b16 %v253
        %v318 = vunpack.c.l.b16 %v254
        %v319 = vunpack.c.l.b16 %v255
        %v320 = vunpack.c.l.b16 %v256
        %v321 = vunpack.c.l.b16 %v257
        %v322 = vunpack.c.l.b16 %v258
        %v323 = vunpack.c.l.b16 %v259
        %v324 = vunpack.c.l.b16 %v260
        %v325 = vunpack.c.l.b16 %v261
        %v326 = vunpack.c.l.b16 %v262
        %v327 = vunpack.c.l.b16 %v263
        %v328 = vunpack.c.l.b16 %v264
        %v329 = vunpack.c.l.b16 %v265
        %v330 = vunpack.c.l.b16 %v266
        %v331 = vunpack.c.l.b16 %v267
        %v332 = vunpack.c.l.b16 %v268
        %v333 = vunpack.c.l.b16 %v269
        %v334 = vunpack.c.l.b16 %v270
        %v335 = vunpack.c.l.b16 %v271
        %v336 = vunpack.c.l.b16 %v272
        %v337 = vunpack.c.l.b16 %v273
        %v338 = vunpack.c.l.b16 %v274
        %v339 = vunpack.c.l.b16 %v275
        %v340 = vunpack.c.l.b16 %v276
        %v341 = vunpack.c.l.b16 %v277
        %v342 = vunpack.c.l.b16 %v278
        %v343 = vunpack.c.l.b16 %v279
        %v344 = vunpack.c.l.b16 %v280
        %v345 = vunpack.c.l.b16 %v281
        %v346 = vunpack.c.l.b16 %v282
        %v347 = vunpack.c.l.b16 %v283
        %v348 = vpack.c.b16 %v317, %v316
        %v349 = vpack.c.b16 %v319, %v318
        %v350 = vpack.c.b16 %v321, %v320
        %v351 = vpack.c.b16 %v323, %v322
        %v352 = vpack.c.b16 %v325, %v324
        %v353 = vpack.c.b16 %v327, %v326
        %v354 = vpack.c.b16 %v329, %v328
        %v355 = vpack.c.b16 %v331, %v330
        %v356 = vpack.c.b16 %v333, %v332
        %v357 = vpack.c.b16 %v335, %v334
        %v358 = vpack.c.b16 %v337, %v336
        %v359 = vpack.c.b16 %v339, %v338
        %v360 = vpack.c.b16 %v341, %v340
        %v361 = vpack.c.b16 %v343, %v342
        %v362 = vpack.c.b16 %v345, %v344
        %v363 = vpack.c.b16 %v347, %v346
        %380 = vmatprep.subr.bf16.mxu0 0
        %381 = vmatpush1.bf16.msra.mxu0 %v348
        %382 = vmatprep.subr.bf16.mxu0 0
        %383 = vmatpush1.bf16.msra.mxu0 %v349
        %384 = vmatprep.subr.bf16.mxu0 0
        %385 = vmatpush1.bf16.msra.mxu0 %v350
        %386 = vmatprep.subr.bf16.mxu0 0
        %387 = vmatpush1.bf16.msra.mxu0 %v351
        %388 = vmatprep.subr.bf16.mxu0 0
        %389 = vmatpush1.bf16.msra.mxu0 %v352
        %390 = vmatprep.subr.bf16.mxu0 0
        %391 = vmatpush1.bf16.msra.mxu0 %v353
        %392 = vmatprep.subr.bf16.mxu0 0
        %393 = vmatpush1.bf16.msra.mxu0 %v354
        %394 = vmatprep.subr.bf16.mxu0 0
        %395 = vmatpush1.bf16.msra.mxu0 %v355
        %396 = vmatprep.subr.bf16.mxu0 0
        %397 = vmatpush1.bf16.msra.mxu0 %v356
        %398 = vmatprep.subr.bf16.mxu0 0
        %399 = vmatpush1.bf16.msra.mxu0 %v357
        %400 = vmatprep.subr.bf16.mxu0 0
        %401 = vmatpush1.bf16.msra.mxu0 %v358
        %402 = vmatprep.subr.bf16.mxu0 0
        %403 = vmatpush1.bf16.msra.mxu0 %v359
        %404 = vmatprep.subr.bf16.mxu0 0
        %405 = vmatpush1.bf16.msra.mxu0 %v360
        %406 = vmatprep.subr.bf16.mxu0 0
        %407 = vmatpush1.bf16.msra.mxu0 %v361
        %408 = vmatprep.subr.bf16.mxu0 0
        %409 = vmatpush1.bf16.msra.mxu0 %v362
        %410 = vmatprep.subr.bf16.mxu0 0
        %411 = vmatpush1.bf16.msra.mxu0 %v363
        %412 = vmatprep.mubr.bf16.mxu0 %v251
        %413 = vmatmul.mubr.bf16.gmra.mrb[0].mxu0 %v250
        %v414 = vpop.f32.mrb[0].mxu0
        %v415 = vadd.f32 0.0, %v414
        %v416 = vpop.f32.mrb[0].mxu0
        %v417 = vpop.f32.mrb[0].mxu0
        %v418 = vpop.f32.mrb[0].mxu0
        %419 = vdwg.mxu0
        %420 = vst [vmem:[%s194] sm:$0xff] %v415
        %s421 = sand.u32 %s72, 1
        %s422 = scalar_lea.sflag [#allocation5], %s421
        %s423 = sand.u32 %s72, 1
        %s424 = smul.addr %s423, 8
        %s425 = scalar_lea.vmem [#allocation6], %s424
        // Predicated region
        $region71: #{tpu_custom_call.1} parent=61 // pred_check
          %p426 = pneg %p82
        $region72: #{tpu_custom_call.1} parent=61 // pred_check_branch
          %428 = sbr.rel (%p426) target = $region74
        $region73: #{tpu_custom_call.1} parent=61 // pred_region
          %s430 = ssub.s32 128, 128
          %431 = vsyncadd %s422, %s430
          %s432 = smul.addr %s17, 128
          %s433 = scalar_lea.hbm %s2, %s432
          %s435 = sshll.u32 %s425, 4
          %s436 = int_to_ptr.vmem [resolvable:$true] %s435
          %438 = dma.vmem_to_hbm [thread:$0]  %s436, 128, %s433, %s422
        $region74: #{tpu_custom_call.1} parent=61 // pred_fallthru
          _
      $region62: #{tpu_custom_call.1} parent=5 // pred_fallthru
        _
      %p439 = scmp.le.s32.totalorder 2, %s12
      // Predicated region
      $region75: #{tpu_custom_call.1} parent=5 // pred_check
        %p440 = pneg %p439
      $region76: #{tpu_custom_call.1} parent=5 // pred_check_branch
        %442 = sbr.rel (%p440) target = $region78
      $region77: #{tpu_custom_call.1} parent=5 // pred_region
        %s443 = ssub.s32 %s12, 2
        // Predicated region
        $region79: #{tpu_custom_call.1} parent=77 // pred_check
          %p444 = pneg %p88
        $region80: #{tpu_custom_call.1} parent=77 // pred_check_branch
          %446 = sbr.rel (%p444) target = $region82
        $region81: #{tpu_custom_call.1} parent=77 // pred_region
          %s447 = sand.u32 %s73, 1
          %s448 = scalar_lea.sflag [#allocation5], %s447
          %s449 = sand.u32 %s73, 1
          %s450 = smul.addr %s449, 8
          %s451 = scalar_lea.vmem [#allocation6], %s450
          %452 = dma.done %s448, 128
        $region82: #{tpu_custom_call.1} parent=77 // pred_fallthru
          _
      $region78: #{tpu_custom_call.1} parent=5 // pred_fallthru
        _
    $region6: #{tpu_custom_call.1} parent=1 // loop_footer
      %s16 = sadd.s32 1, %s12
    $region7: #{tpu_custom_call.1} parent=1 // loop_footer_branch
      %11 = sbr.rel target = $region3
    $region8: #{tpu_custom_call.1} parent=1 // loop_exit
      _
    %453 = vsyncpa [#allocation4], 1
    %s454 = scalar_lea.sflag [#allocation4], 1
    %455 = vsyncpa %s454, 1
    %456 = vsyncpa [#allocation5], 1
    %s457 = scalar_lea.sflag [#allocation5], 1
    %458 = vsyncpa %s457, 1

</llo_original>
